<compile_context>
chip_gen: v6e
topology: v6e:2x2x1
jax: 0.10.0
libtpu: 0.0.40
codegen_flags: <defaults>
</compile_context>

<pallas_src>
import functools
import math

import jax
import jax.numpy as jnp
from jax.experimental import pallas as pl
from jax.experimental.pallas import tpu as pltpu


def gcn_kernel(x_ref, adj_ref, w_ref, ws_ref, bias_ref, out_ref,
               hn_scr, hs_scr, *, n_nodes, bblk, dout, row_block, compute_dtype):
    """One (batch-block, node-row-tile) grid step.

    x_ref    : (bblk*N, Din)   features of this batch block      (compute dtype)
    adj_ref  : (TM, N)         degree-normalized adjacency rows  (compute dtype)
    w_ref    : (Din, Dout)     neighbour weight                  (compute dtype)
    ws_ref   : (Din, Dout)     self weight                       (compute dtype)
    bias_ref : (1, bblk*Dout)  (b + b_self) tiled along lanes    (f32)
    out_ref  : (TM, bblk*Dout) node-major output tile
    hn_scr   : (N, bblk*Dout)  node-major X @ W                  (compute dtype)
    hs_scr   : (N, bblk*Dout)  node-major X @ W_self             (f32)
    """
    r = pl.program_id(1)

    # Projection once per batch block (row tile 0); stays resident in scratch.
    @pl.when(r == 0)
    def _():
        x = x_ref[...]
        hn = jnp.dot(x, w_ref[...], preferred_element_type=jnp.float32)
        hs = jnp.dot(x, ws_ref[...], preferred_element_type=jnp.float32)
        # Batch-major -> node-major repack via a single XLU transpose per
        # projection (no lane-unaligned slice/concat, no masked stores).
        hn = hn.astype(compute_dtype).reshape(bblk, n_nodes, dout)
        hn_scr[...] = pltpu.einshape("bnd->nbd", hn).reshape(n_nodes, bblk * dout)
        hs = hs.reshape(bblk, n_nodes, dout)
        hs_scr[...] = pltpu.einshape("bnd->nbd", hs).reshape(n_nodes, bblk * dout)

    # Aggregate: this row tile of (D^-1 A) against all nodes' projections.
    agg = jnp.dot(adj_ref[...], hn_scr[...], preferred_element_type=jnp.float32)

    # Epilogue: self term for this row tile + fused bias, lane-dense store.
    row0 = pl.multiple_of(r * row_block, row_block)
    hs_rows = hs_scr[pl.ds(row0, row_block), :]
    out_ref[...] = (agg + hs_rows + bias_ref[...]).astype(out_ref.dtype)


def graph_conv(node_feat, adj, w, b, w_self, b_self, *,
               block_b=None, row_block=None, compute_dtype=jnp.bfloat16):
    """Dense-adjacency GraphConv forward (normalize_adj=True, self_layer=True).

    node_feat: (B, N, Din); adj: (N, N) (no self-loops); w/w_self: (Din, Dout);
    b/b_self: (1, Dout).  Returns (B, N, Dout) in node_feat.dtype.
    """
    B, N, Din = node_feat.shape
    Dout = w.shape[1]
    cd = jnp.dtype(compute_dtype)
    csize = cd.itemsize
    f32b = 4

    # ---- Batch block: target a >=256-lane aggregation RHS / output store
    # (v6e/v7x MXU column utilization, unmasked vst), but keep >=2 parallel grid
    # steps when the batch allows it so v7x's two TensorCores both get work.
    if block_b is None:
        block_b = max(1, min(B, -(-256 // Dout)))
        if block_b >= B and B >= 2:
            block_b = B // 2
        while B % block_b:
            block_b -= 1
    if (block_b * N) % 8 and block_b != B:
        block_b = B          # keep the feature BlockSpec (8,.)-legal for odd N
    G = B // block_b
    lanes = block_b * Dout   # output lane width (ideally a multiple of 128)

    # ---- VMEM budget: derive from the chip, ~25% headroom for compiler scratch
    # (v7x: 64 MiB physical; v5e/v6e: 128 MiB).
    try:  # capability probe only -- not an error guard around the kernel build.
        vmem_phys = pltpu.get_tpu_info().vmem_capacity_bytes
    except Exception:
        vmem_phys = 64 << 20
    vmem_ceiling = int(vmem_phys * 3 // 4)

    # ---- Adjacency row tile: keep the full (N, N) adjacency resident only if
    # its double-buffered tile fits in ~1/4 of the budget; otherwise pick the
    # largest multiple-of-8 divisor of N that does.
    if row_block is None:
        row_block = N
        if 2 * N * N * csize > vmem_ceiling // 4:
            cand = (N // 8) * 8
            while cand >= 8:
                if N % cand == 0 and 2 * cand * N * csize <= vmem_ceiling // 4:
                    row_block = cand
                    break
                cand -= 8
            # TODO(synk): pad / K-accumulate when N has no suitable divisor.
    assert N % row_block == 0, "row_block must divide num_nodes"
    assert row_block == N or row_block % 8 == 0, "row_block must be a multiple of 8"
    R = N // row_block

    # ---- Batch-invariant prep (one XLA pass, not per grid step): fold 1/degree
    # into the adjacency (D^-1 A) in f32, then cast operands to compute dtype.
    inv_norm = 1.0 / jnp.sum(adj.astype(jnp.float32), axis=-1, keepdims=True)
    adj_scaled = (adj * inv_norm).astype(cd)       # rows sum to 1 (nonzero deg)
    x2d = node_feat.reshape(B * N, Din).astype(cd)
    w_c = w.astype(cd)
    ws_c = w_self.astype(cd)
    # Rows of D^-1 A sum to 1, so (D^-1 A)(XW + b) == (D^-1 A)(XW) + b: add both
    # biases once in the epilogue, tiled to the node-major lane layout (f32).
    bias = jnp.tile((b + b_self).astype(jnp.float32).reshape(1, Dout), (1, block_b))

    kernel = functools.partial(gcn_kernel, n_nodes=N, bblk=block_b, dout=Dout,
                               row_block=row_block, compute_dtype=cd)

    # Advisory cost estimate for the XLA scheduler.
    flops = 4 * B * N * Din * Dout + 2 * B * N * N * Dout + 2 * B * N * Dout
    bytes_accessed = (csize * (B * N * Din + N * N + 2 * Din * Dout)
                      + f32b * (lanes + B * N * Dout))
    cost = pl.CostEstimate(flops=flops, transcendentals=0,
                           bytes_accessed=bytes_accessed)

    # Per-step VMEM estimate (double-buffered operands + scratch + temporaries).
    vmem_est = (2 * block_b * N * Din * csize          # features
                + 2 * row_block * N * csize            # adjacency row tile
                + 4 * Din * Dout * csize               # w, w_self
                + 2 * lanes * f32b                     # bias
                + 2 * row_block * lanes * f32b         # output tile
                + N * lanes * (csize + f32b)           # hn / hs scratch
                + 4 * block_b * N * Dout * f32b)       # projection temporaries
    vmem_limit = int(min(max(2 * vmem_est, 32 << 20), vmem_ceiling))

    # NOTE: remaining grid-invariant operands (w, w_self, bias) are tiny, so the
    # default double-buffering costs negligible VMEM; pl.Buffered(1) not needed.
    out_nm = pl.pallas_call(
        kernel,
        out_shape=jax.ShapeDtypeStruct((G, N, lanes), node_feat.dtype),
        grid_spec=pltpu.PrefetchScalarGridSpec(
            num_scalar_prefetch=0,
            grid=(G, R),
            in_specs=[
                pl.BlockSpec((block_b * N, Din), lambda g, r: (g, 0)),   # X
                pl.BlockSpec((row_block, N), lambda g, r: (r, 0)),       # D^-1 A
                pl.BlockSpec((Din, Dout), lambda g, r: (0, 0)),          # W
                pl.BlockSpec((Din, Dout), lambda g, r: (0, 0)),          # W_self
                pl.BlockSpec((1, lanes), lambda g, r: (0, 0)),           # bias
            ],
            out_specs=pl.BlockSpec((None, row_block, lanes),
                                   lambda g, r: (g, r, 0)),
            scratch_shapes=[
                pltpu.VMEM((N, lanes), cd),            # node-major X @ W
                pltpu.VMEM((N, lanes), jnp.float32),   # node-major X @ W_self
            ]),
        compiler_params=pltpu.CompilerParams(
            dimension_semantics=("parallel", "arbitrary"),
            vmem_limit_bytes=vmem_limit),
        cost_estimate=cost,
    )(x2d, adj_scaled, w_c, ws_c, bias)

    # Node-major (G, N, bblk*Dout) -> batch-major (B, N, Dout) relayout.
    # TODO(synk): when Dout % 128 == 0, store batch-major directly from the
    # kernel (in-kernel XLU transpose) and drop this extra HBM pass.
    out = out_nm.reshape(G, N, block_b, Dout).transpose(0, 2, 1, 3)
    return out.reshape(B, N, Dout)


def xavier_uniform(key, fan_out, fan_in, dtype=jnp.float32):
    # Matches nn.init.xavier_uniform_ on a (fan_out, fan_in) weight.
    limit = math.sqrt(6.0 / (fan_in + fan_out))
    return jax.random.uniform(key, (fan_out, fan_in), dtype, -limit, limit)


def reference(node_feat, adj, w, b, w_self, b_self):
    hp = jax.lax.Precision.HIGHEST
    h = jnp.matmul(node_feat, w, precision=hp) + b
    norm = jnp.matmul(adj, jnp.ones((adj.shape[0], 1), adj.dtype), precision=hp)
    agg = jnp.einsum("ij,bjd->bid", adj, h, precision=hp) / norm
    return agg + jnp.matmul(node_feat, w_self, precision=hp) + b_self


if __name__ == "__main__":
    B, N, Din, Dout = 2, 16, 32, 32
    key = jax.random.PRNGKey(0)
    k_feat, k_adj, k_w, k_b, k_ws, k_bs = jax.random.split(key, 6)

    node_feat = jax.random.uniform(k_feat, (B, N, Din), jnp.float32)

    # Dense adjacency, no self-loops, at least one incoming edge per row.
    adj = (jax.random.uniform(k_adj, (N, N)) > 0.6).astype(jnp.float32)
    adj = adj * (1.0 - jnp.eye(N, dtype=jnp.float32))
    adj = adj.at[:, 0].set(jnp.where(jnp.sum(adj, axis=-1) == 0, 1.0, adj[:, 0]))
    adj = adj * (1.0 - jnp.eye(N, dtype=jnp.float32))
    adj = adj.at[0, 1].set(1.0)  # guarantee row 0 has an edge

    # Parameters: PyTorch Linear stores weight as (Dout, Din); pass transposed.
    w_t = xavier_uniform(k_w, Dout, Din)
    ws_t = xavier_uniform(k_ws, Dout, Din)
    w, w_self = w_t.T, ws_t.T                                   # (Din, Dout)
    b = jax.random.uniform(k_b, (1, Dout), jnp.float32, -1.0, 1.0)
    b_self = jax.random.uniform(k_bs, (1, Dout), jnp.float32, -1.0, 1.0)

    ref = reference(node_feat, adj, w, b, w_self, b_self)

    # f32 MXU path: tolerance covers MXU f32 pass rounding + the mathematically
    # equivalent reassociation of the bias add / 1/degree normalization.
    out = graph_conv(node_feat, adj, w, b, w_self, b_self,
                     compute_dtype=jnp.float32)
    out = jax.block_until_ready(out)
    assert out.shape == (B, N, Dout)
    assert jnp.allclose(out, ref, atol=5e-3, rtol=5e-3)

    # Adjacency row-tiling path (two row tiles per batch block).
    out_rt = graph_conv(node_feat, adj, w, b, w_self, b_self,
                        row_block=8, compute_dtype=jnp.float32)
    out_rt = jax.block_until_ready(out_rt)
    assert jnp.allclose(out_rt, ref, atol=5e-3, rtol=5e-3)

    # Default bf16 MXU fast path (v5e/v6e/v7x): f32 accumulate + f32 epilogue,
    # so only bf16 input/adjacency rounding remains -> generous tolerance.
    out_bf16 = graph_conv(node_feat, adj, w, b, w_self, b_self)
    out_bf16 = jax.block_until_ready(out_bf16)
    assert out_bf16.shape == (B, N, Dout)
    assert jnp.allclose(out_bf16, ref, atol=2e-1)

    print("KERNEL_OK")
</pallas_src>

<mosaic_0001>
module attributes {stable_mosaic.version = 11 : i64} {
  func.func @gcn_kernel(%arg0: i32, %arg1: i32, %arg2: memref<16x32xf32, #tpu.memory_space<vmem>>, %arg3: memref<16x16xf32, #tpu.memory_space<vmem>>, %arg4: memref<32x32xf32, #tpu.memory_space<vmem>>, %arg5: memref<32x32xf32, #tpu.memory_space<vmem>>, %arg6: memref<1x32xf32, #tpu.memory_space<vmem>>, %arg7: memref<1x16x32xf32, #tpu.memory_space<vmem>>, %arg8: memref<16x32xf32, #tpu.memory_space<vmem>>, %arg9: memref<16x32xf32, #tpu.memory_space<vmem>>) attributes {dimension_semantics = [#tpu.dimension_semantics<parallel>, #tpu.dimension_semantics<arbitrary>], iteration_bounds = array<i64: 2, 1>, scalar_prefetch = 0 : i64, scratch_operands = 2 : i64, tpu.core_type = #tpu.core_type<tc>, window_params = [{transform_indices = @transform_0, window_bounds = array<i64: 16, 32>}, {transform_indices = @transform_1, window_bounds = array<i64: 16, 16>}, {pipeline_mode = #tpu.pipeline_mode<synchronous>, transform_indices = @transform_2, window_bounds = array<i64: 32, 32>}, {pipeline_mode = #tpu.pipeline_mode<synchronous>, transform_indices = @transform_3, window_bounds = array<i64: 32, 32>}, {pipeline_mode = #tpu.pipeline_mode<synchronous>, transform_indices = @transform_4, window_bounds = array<i64: 1, 32>}, {transform_indices = @transform_5, window_bounds = array<i64: 1, 16, 32>}]} {
    %c0_i32 = arith.constant 0 : i32
    %0 = arith.cmpi eq, %arg1, %c0_i32 : i32
    %1 = arith.extui %0 : i1 to i32
    %c0_i32_0 = arith.constant 0 : i32
    %2 = arith.cmpi ne, %1, %c0_i32_0 : i32
    scf.if %2 {
      %c0_10 = arith.constant 0 : index
      %c0_11 = arith.constant 0 : index
      %17 = vector.load %arg2[%c0_10, %c0_11] : memref<16x32xf32, #tpu.memory_space<vmem>>, vector<16x32xf32>
      %c0_12 = arith.constant 0 : index
      %c0_13 = arith.constant 0 : index
      %18 = vector.load %arg4[%c0_12, %c0_13] : memref<32x32xf32, #tpu.memory_space<vmem>>, vector<32x32xf32>
      %cst_14 = arith.constant dense<0.000000e+00> : vector<16x32xf32>
      %19 = tpu.matmul %17, %18, %cst_14 {dimension_numbers = #tpu.dot_dimension_numbers<[1], [0], [0], [1], [0, 0, 1, 1], [], []>} : vector<16x32xf32>, vector<32x32xf32>, vector<16x32xf32> -> vector<16x32xf32>
      %c0_15 = arith.constant 0 : index
      %c0_16 = arith.constant 0 : index
      %20 = vector.load %arg5[%c0_15, %c0_16] : memref<32x32xf32, #tpu.memory_space<vmem>>, vector<32x32xf32>
      %cst_17 = arith.constant dense<0.000000e+00> : vector<16x32xf32>
      %21 = tpu.matmul %17, %20, %cst_17 {dimension_numbers = #tpu.dot_dimension_numbers<[1], [0], [0], [1], [0, 0, 1, 1], [], []>} : vector<16x32xf32>, vector<32x32xf32>, vector<16x32xf32> -> vector<16x32xf32>
      %22 = vector.shape_cast %19 : vector<16x32xf32> to vector<1x16x32xf32>
      %23 = tpu.transpose %22, [1, 0, 2] : vector<1x16x32xf32> -> vector<16x1x32xf32>
      %24 = vector.shape_cast %23 : vector<16x1x32xf32> to vector<16x32xf32>
      %c0_18 = arith.constant 0 : index
      %c0_19 = arith.constant 0 : index
      %25 = vector.load %arg8[%c0_18, %c0_19] : memref<16x32xf32, #tpu.memory_space<vmem>>, vector<16x32xf32>
      tpu.vector_store %arg8[%c0_18, %c0_19], %24 {strides = array<i32>} : memref<16x32xf32, #tpu.memory_space<vmem>>, vector<16x32xf32>,
      %26 = vector.shape_cast %21 : vector<16x32xf32> to vector<1x16x32xf32>
      %27 = tpu.transpose %26, [1, 0, 2] : vector<1x16x32xf32> -> vector<16x1x32xf32>
      %28 = vector.shape_cast %27 : vector<16x1x32xf32> to vector<16x32xf32>
      %c0_20 = arith.constant 0 : index
      %c0_21 = arith.constant 0 : index
      %29 = vector.load %arg9[%c0_20, %c0_21] : memref<16x32xf32, #tpu.memory_space<vmem>>, vector<16x32xf32>
      tpu.vector_store %arg9[%c0_20, %c0_21], %28 {strides = array<i32>} : memref<16x32xf32, #tpu.memory_space<vmem>>, vector<16x32xf32>,
    } else {
    }
    %c0 = arith.constant 0 : index
    %c0_1 = arith.constant 0 : index
    %3 = vector.load %arg3[%c0, %c0_1] : memref<16x16xf32, #tpu.memory_space<vmem>>, vector<16x16xf32>
    %c0_2 = arith.constant 0 : index
    %c0_3 = arith.constant 0 : index
    %4 = vector.load %arg8[%c0_2, %c0_3] : memref<16x32xf32, #tpu.memory_space<vmem>>, vector<16x32xf32>
    %cst = arith.constant dense<0.000000e+00> : vector<16x32xf32>
    %5 = tpu.matmul %3, %4, %cst {dimension_numbers = #tpu.dot_dimension_numbers<[1], [0], [0], [1], [0, 0, 1, 1], [], []>} : vector<16x16xf32>, vector<16x32xf32>, vector<16x32xf32> -> vector<16x32xf32>
    %c16_i32 = arith.constant 16 : i32
    %6 = arith.muli %arg1, %c16_i32 : i32
    %7 = tpu.assume_multiple %6, 16 : i32
    %8 = arith.index_cast %7 : i32 to index
    %c0_4 = arith.constant 0 : index
    %9 = vector.load %arg9[%8, %c0_4] : memref<16x32xf32, #tpu.memory_space<vmem>>, vector<16x32xf32>
    %10 = arith.addf %5, %9 : vector<16x32xf32>
    %c0_5 = arith.constant 0 : index
    %c0_6 = arith.constant 0 : index
    %11 = vector.load %arg6[%c0_5, %c0_6] : memref<1x32xf32, #tpu.memory_space<vmem>>, vector<1x32xf32>
    %12 = vector.broadcast %11 : vector<1x32xf32> to vector<16x32xf32>
    %13 = arith.addf %10, %12 : vector<16x32xf32>
    %c0_7 = arith.constant 0 : index
    %c0_8 = arith.constant 0 : index
    %c0_9 = arith.constant 0 : index
    %14 = vector.load %arg7[%c0_7, %c0_8, %c0_9] : memref<1x16x32xf32, #tpu.memory_space<vmem>>, vector<1x16x32xf32>
    %15 = vector.shape_cast %14 : vector<1x16x32xf32> to vector<16x32xf32>
    %16 = vector.shape_cast %13 : vector<16x32xf32> to vector<1x16x32xf32>
    tpu.vector_store %arg7[%c0_7, %c0_8, %c0_9], %16 {strides = array<i32>} : memref<1x16x32xf32, #tpu.memory_space<vmem>>, vector<1x16x32xf32>,
    return
  }
  func.func @transform_0(%arg0: i32, %arg1: i32) -> (i32, i32) {
    %c0_i32 = arith.constant 0 : i32
    %c0_i32_0 = arith.constant 0 : i32
    return %arg0, %c0_i32 : i32, i32
  }
  func.func @transform_1(%arg0: i32, %arg1: i32) -> (i32, i32) {
    %c0_i32 = arith.constant 0 : i32
    %c0_i32_0 = arith.constant 0 : i32
    return %arg1, %c0_i32 : i32, i32
  }
  func.func @transform_2(%arg0: i32, %arg1: i32) -> (i32, i32) {
    %c0_i32 = arith.constant 0 : i32
    %c0_i32_0 = arith.constant 0 : i32
    %c0_i32_1 = arith.constant 0 : i32
    return %c0_i32, %c0_i32_0 : i32, i32
  }
  func.func @transform_3(%arg0: i32, %arg1: i32) -> (i32, i32) {
    %c0_i32 = arith.constant 0 : i32
    %c0_i32_0 = arith.constant 0 : i32
    %c0_i32_1 = arith.constant 0 : i32
    return %c0_i32, %c0_i32_0 : i32, i32
  }
  func.func @transform_4(%arg0: i32, %arg1: i32) -> (i32, i32) {
    %c0_i32 = arith.constant 0 : i32
    %c0_i32_0 = arith.constant 0 : i32
    %c0_i32_1 = arith.constant 0 : i32
    return %c0_i32, %c0_i32_0 : i32, i32
  }
  func.func @transform_5(%arg0: i32, %arg1: i32) -> (i32, i32, i32) {
    %c0_i32 = arith.constant 0 : i32
    %c0_i32_0 = arith.constant 0 : i32
    return %arg0, %arg1, %c0_i32 : i32, i32, i32
  }
}

</mosaic_0001>

<llo_original>
// kernel: tpu_custom_call.1
$region0: #{tpu_custom_call.1}
  #allocation0 [shape = 'u32[]', space=smem, size = 0x4, offset = 0x4, fixed_abs, tag = 'smem constant byte address 0x4 - core index']
  #allocation1 [shape = 'u32[144,128]{1,0:T(1,128)}', space=vmem, size = 0x12000, scoped, tag = 'internal scratch']
  #allocation2 [shape = 'f32[16,32]{1,0:T(8,128)}', space=vmem, size = 0x2000, scoped, tag = 'scratch operand']
  #allocation3 [shape = 'f32[16,32]{1,0:T(8,128)}', space=vmem, size = 0x2000, scoped, tag = 'scratch operand']
  %s0 = inlined_call_operand.hbm [shape: f32[32,32], index: 0, kind: input, shape index: {}]
  %s1 = inlined_call_operand.hbm [shape: f32[16,16], index: 1, kind: input, shape index: {}]
  %s2 = inlined_call_operand.hbm [shape: f32[32,32], index: 2, kind: input, shape index: {}]
  %s3 = inlined_call_operand.hbm [shape: f32[32,32], index: 3, kind: input, shape index: {}]
  %s4 = inlined_call_operand.vmem [shape: f32[1,32], index: 4, kind: input, shape index: {}]
  %s5 = inlined_call_operand.hbm [shape: f32[2,16,32], index: 5, kind: output, shape index: {}]
  %s6 = sld [smem:[#allocation0]]
  $region73: #{tpu_custom_call.1} parent=0
    _
  %s8 = ssub.s32 1, %s6
  %s9 = scalar_select 0, %s8, %s6
  $region1: #{tpu_custom_call.1} parent=0
    #allocation4 [shape = 'u8[16384]{0}', space=vmem, size = 0x4000, scoped, tag = 'input window, operand 0']
    #allocation5 [shape = 's32[2]{0}', space=sflag, size = 0x8, scoped, tag = 'scoped memory for tpu_custom_call.1']
    #allocation6 [shape = 's32[2]{0}', space=sflag, size = 0x8, scoped, tag = 'scoped memory for tpu_custom_call.1']
    #allocation7 [shape = 'u8[8192]{0}', space=vmem, size = 0x2000, scoped, tag = 'input window, operand 1, single buffered']
    #allocation8 [shape = 's32[1]{0}', space=sflag, size = 0x4, scoped, tag = 'scoped memory for tpu_custom_call.1']
    #allocation9 [shape = 'u8[16384]{0}', space=vmem, size = 0x4000, scoped, tag = 'input window, operand 2, single buffered']
    #allocation10 [shape = 'u8[16384]{0}', space=vmem, size = 0x4000, scoped, tag = 'input window, operand 3, single buffered']
    #allocation11 [shape = 's32[1]{0}', space=sflag, size = 0x4, scoped, tag = 'scoped memory for tpu_custom_call.1']
    #allocation12 [shape = 'u8[16384]{0}', space=vmem, size = 0x4000, scoped, tag = 'output window, operand 0']
    %10 = vsyncpa [#allocation5], 0
    %s11 = scalar_lea.sflag [#allocation5], 1
    %12 = vsyncpa %s11, 0
    %13 = vsyncpa [#allocation8], 0
    %14 = vsyncpa [#allocation11], 0
    %15 = vsyncpa [#allocation6], 0
    %s16 = scalar_lea.sflag [#allocation6], 1
    %17 = vsyncpa %s16, 0
    loop: start=0, step=1, limit=4
    $region2: #{tpu_custom_call.1} parent=1 // loop_pre_header
      _
    $region3: #{tpu_custom_call.1} parent=1 // loop_header
      %s19 = sphi 0, %s23
      %p20 = scmp.ge.s32.totalorder %s19, 4
      %s26 = sphi 0, %s38
      %s27 = sphi 0, %s34
      %s28 = sphi 0, %s26
      %s29 = sphi 0, %s27
      %s30 = sphi 0, %s28
      %s31 = sphi 0, %s29
      %s41 = sphi 0, %s43
      %s44 = sphi 0, %s41
      %s45 = sphi 0, %s44
      %s61 = sphi 0, %s45
      %s67 = sphi 0, %s69
      %s70 = sphi 0, %s67
      %s71 = sphi 0, %s70
      %s87 = sphi 0, %s71
      %s91 = sphi 0, %s91
      %s93 = sphi 0, %s91
      %s94 = sphi 0, %s93
      %s108 = sphi 0, %s94
      %s112 = sphi 0, %s112
      %s114 = sphi 0, %s112
      %s115 = sphi 0, %s114
      %s129 = sphi 0, %s115
      %s133 = sphi 0, %s133
      %s135 = sphi 0, %s133
      %s136 = sphi 0, %s135
      %s150 = sphi 0, %s136
      %s158 = sphi 0, %s160
      %s161 = sphi 0, %s158
      %s162 = sphi 0, %s161
      %s178 = sphi 0, %s162
    $region4: #{tpu_custom_call.1} parent=1 // loop_header_branch
      %22 = sbr.rel (%p20) target = $region8
    $region5: #{tpu_custom_call.1} parent=1 // loop_body
      %s24 = ssub.s32 %s19, 1
      %s25 = ssub.s32 %s19, 2
      %s32 = sadd.s32 1, %s27
      %p33 = scmp.ge.s32.totalorder %s32, 1
      %s34 = scalar_select %p33, 0, %s32
      %s35 = sadd.s32 1, %s26
      %s36 = scalar_select %p33, %s35, %s26
      %p37 = scmp.ge.s32.totalorder %s36, 2
      %s38 = scalar_select %p37, 0, %s36
      %s39 = ssub.s32 %s26, %s38
      %p40 = scmp.eq.s32.totalorder %s39, 0
      %s42 = sadd.s32 %s41, 1
      %s43 = scalar_select %p40, %s41, %s42
      %p46 = pneg %p40
      %p47 = scmp.eq.s32.totalorder %s19, 1
      %p48 = por %p46, %p47
      %p49 = scmp.ne.s32.totalorder %s41, %s44
      %p50 = scmp.eq.s32.totalorder %s19, 0
      %p51 = por %p49, %p50
      %p52 = scmp.ne.s32.totalorder %s41, %s44
      %p53 = scmp.eq.s32.totalorder %s24, 1
      %p54 = por %p52, %p53
      %p55 = scmp.ne.s32.totalorder %s44, %s45
      %p56 = scmp.eq.s32.totalorder %s24, 0
      %p57 = por %p55, %p56
      %p58 = scmp.ne.s32.totalorder %s44, %s45
      %p59 = scmp.eq.s32.totalorder %s25, 1
      %p60 = por %p58, %p59
      %p62 = scmp.ne.s32.totalorder %s45, %s61
      %p63 = scmp.eq.s32.totalorder %s25, 0
      %p64 = por %p62, %p63
      %s65 = ssub.s32 %s27, %s34
      %p66 = scmp.eq.s32.totalorder %s65, 0
      %s68 = sadd.s32 %s67, 1
      %s69 = scalar_select %p66, %s67, %s68
      %p72 = pneg %p66
      %p73 = scmp.eq.s32.totalorder %s19, 1
      %p74 = por %p72, %p73
      %p75 = scmp.ne.s32.totalorder %s67, %s70
      %p76 = scmp.eq.s32.totalorder %s19, 0
      %p77 = por %p75, %p76
      %p78 = scmp.ne.s32.totalorder %s67, %s70
      %p79 = scmp.eq.s32.totalorder %s24, 1
      %p80 = por %p78, %p79
      %p81 = scmp.ne.s32.totalorder %s70, %s71
      %p82 = scmp.eq.s32.totalorder %s24, 0
      %p83 = por %p81, %p82
      %p84 = scmp.ne.s32.totalorder %s70, %s71
      %p85 = scmp.eq.s32.totalorder %s25, 1
      %p86 = por %p84, %p85
      %p88 = scmp.ne.s32.totalorder %s71, %s87
      %p89 = scmp.eq.s32.totalorder %s25, 0
      %p90 = por %p88, %p89
      %s92 = sadd.s32 %s91, 1
      %p95 = scmp.eq.s32.totalorder %s19, 1
      %p96 = scmp.ne.s32.totalorder %s91, %s93
      %p97 = scmp.eq.s32.totalorder %s19, 0
      %p98 = por %p96, %p97
      %p99 = scmp.ne.s32.totalorder %s91, %s93
      %p100 = scmp.eq.s32.totalorder %s24, 1
      %p101 = por %p99, %p100
      %p102 = scmp.ne.s32.totalorder %s93, %s94
      %p103 = scmp.eq.s32.totalorder %s24, 0
      %p104 = por %p102, %p103
      %p105 = scmp.ne.s32.totalorder %s93, %s94
      %p106 = scmp.eq.s32.totalorder %s25, 1
      %p107 = por %p105, %p106
      %p109 = scmp.ne.s32.totalorder %s94, %s108
      %p110 = scmp.eq.s32.totalorder %s25, 0
      %p111 = por %p109, %p110
      %s113 = sadd.s32 %s112, 1
      %p116 = scmp.eq.s32.totalorder %s19, 1
      %p117 = scmp.ne.s32.totalorder %s112, %s114
      %p118 = scmp.eq.s32.totalorder %s19, 0
      %p119 = por %p117, %p118
      %p120 = scmp.ne.s32.totalorder %s112, %s114
      %p121 = scmp.eq.s32.totalorder %s24, 1
      %p122 = por %p120, %p121
      %p123 = scmp.ne.s32.totalorder %s114, %s115
      %p124 = scmp.eq.s32.totalorder %s24, 0
      %p125 = por %p123, %p124
      %p126 = scmp.ne.s32.totalorder %s114, %s115
      %p127 = scmp.eq.s32.totalorder %s25, 1
      %p128 = por %p126, %p127
      %p130 = scmp.ne.s32.totalorder %s115, %s129
      %p131 = scmp.eq.s32.totalorder %s25, 0
      %p132 = por %p130, %p131
      %s134 = sadd.s32 %s133, 1
      %p137 = scmp.eq.s32.totalorder %s19, 1
      %p138 = scmp.ne.s32.totalorder %s133, %s135
      %p139 = scmp.eq.s32.totalorder %s19, 0
      %p140 = por %p138, %p139
      %p141 = scmp.ne.s32.totalorder %s133, %s135
      %p142 = scmp.eq.s32.totalorder %s24, 1
      %p143 = por %p141, %p142
      %p144 = scmp.ne.s32.totalorder %s135, %s136
      %p145 = scmp.eq.s32.totalorder %s24, 0
      %p146 = por %p144, %p145
      %p147 = scmp.ne.s32.totalorder %s135, %s136
      %p148 = scmp.eq.s32.totalorder %s25, 1
      %p149 = por %p147, %p148
      %p151 = scmp.ne.s32.totalorder %s136, %s150
      %p152 = scmp.eq.s32.totalorder %s25, 0
      %p153 = por %p151, %p152
      %s154 = ssub.s32 %s26, %s38
      %s155 = ssub.s32 %s27, %s34
      %s156 = sor.u32 %s154, %s155
      %p157 = scmp.eq.s32.totalorder %s156, 0
      %s159 = sadd.s32 %s158, 1
      %s160 = scalar_select %p157, %s158, %s159
      %p163 = pneg %p157
      %p164 = scmp.eq.s32.totalorder %s19, 1
      %p165 = por %p163, %p164
      %p166 = scmp.ne.s32.totalorder %s158, %s161
      %p167 = scmp.eq.s32.totalorder %s19, 0
      %p168 = por %p166, %p167
      %p169 = scmp.ne.s32.totalorder %s158, %s161
      %p170 = scmp.eq.s32.totalorder %s24, 1
      %p171 = por %p169, %p170
      %p172 = scmp.ne.s32.totalorder %s161, %s162
      %p173 = scmp.eq.s32.totalorder %s24, 0
      %p174 = por %p172, %p173
      %p175 = scmp.ne.s32.totalorder %s161, %s162
      %p176 = scmp.eq.s32.totalorder %s25, 1
      %p177 = por %p175, %p176
      %p179 = scmp.ne.s32.totalorder %s162, %s178
      %p180 = scmp.eq.s32.totalorder %s25, 0
      %p181 = por %p179, %p180
      %p182 = scmp.le.s32.totalorder 1, %s19
      %p183 = scmp.lt.s32.totalorder %s19, 3
      %p184 = pnand %p182, %p183
      %p185 = pneg %p184
      // Predicated region
      $region9: #{tpu_custom_call.1} parent=5 // pred_check
        _
      $region10: #{tpu_custom_call.1} parent=5 // pred_check_branch
        %187 = sbr.rel (%p184) target = $region12
      $region11: #{tpu_custom_call.1} parent=5 // pred_region
        %s188 = ssub.s32 %s19, 1
        // Predicated region
        $region13: #{tpu_custom_call.1} parent=11 // pred_check
          %p189 = pneg %p83
        $region14: #{tpu_custom_call.1} parent=11 // pred_check_branch
          %191 = sbr.rel (%p189) target = $region16
        $region15: #{tpu_custom_call.1} parent=11 // pred_region
          %s192 = smul.u32 2, %s29
          %s194 = ssub.s32 256, 256
          %195 = vsyncadd [#allocation8], %s194
          %s196 = smul.addr %s192, 128
          %s197 = scalar_lea.hbm %s1, %s196
          %s198 = sshll.u32 [#allocation7], 4
          %s199 = int_to_ptr.vmem [resolvable:$true] %s198
          %204 = dma.hbm_to_vmem [thread:$0]  %s197, 256, %s199, [#allocation8], 128, 128, 8
        $region16: #{tpu_custom_call.1} parent=11 // pred_fallthru
          _
        // Predicated region
        $region17: #{tpu_custom_call.1} parent=11 // pred_check
          %p205 = pneg %p104
        $region18: #{tpu_custom_call.1} parent=11 // pred_check_branch
          %207 = sbr.rel (%p205) target = $region20
        $region19: #{tpu_custom_call.1} parent=11 // pred_region
          %s209 = ssub.s32 512, 512
          %210 = vsyncadd [#allocation8], %s209
          %s211 = sshll.u32 [#allocation9], 4
          %s212 = int_to_ptr.vmem [resolvable:$true] %s211
          %217 = dma.hbm_to_vmem [thread:$0]  %s2, 512, %s212, [#allocation8], 128, 128, 8
        $region20: #{tpu_custom_call.1} parent=11 // pred_fallthru
          _
        // Predicated region
        $region21: #{tpu_custom_call.1} parent=11 // pred_check
          %p218 = pneg %p125
        $region22: #{tpu_custom_call.1} parent=11 // pred_check_branch
          %220 = sbr.rel (%p218) target = $region24
        $region23: #{tpu_custom_call.1} parent=11 // pred_region
          %s222 = ssub.s32 512, 512
          %223 = vsyncadd [#allocation11], %s222
          %s224 = sshll.u32 [#allocation10], 4
          %s225 = int_to_ptr.vmem [resolvable:$true] %s224
          %230 = dma.hbm_to_vmem [thread:$0]  %s3, 512, %s225, [#allocation11], 128, 128, 8
        $region24: #{tpu_custom_call.1} parent=11 // pred_fallthru
          _
        // Predicated region
        $region25: #{tpu_custom_call.1} parent=11 // pred_check
          %p231 = pneg %p146
        $region26: #{tpu_custom_call.1} parent=11 // pred_check_branch
          %233 = sbr.rel (%p231) target = $region28
        $region27: #{tpu_custom_call.1} parent=11 // pred_region
          _
        $region28: #{tpu_custom_call.1} parent=11 // pred_fallthru
          _
      $region12: #{tpu_custom_call.1} parent=5 // pred_fallthru
        _
      %p234 = scmp.lt.s32.totalorder %s19, 2
      // Predicated region
      $region29: #{tpu_custom_call.1} parent=5 // pred_check
        %p235 = pneg %p234
      $region30: #{tpu_custom_call.1} parent=5 // pred_check_branch
        %237 = sbr.rel (%p235) target = $region32
      $region31: #{tpu_custom_call.1} parent=5 // pred_region
        // Predicated region
        $region33: #{tpu_custom_call.1} parent=31 // pred_check
          %p238 = pneg %p51
        $region34: #{tpu_custom_call.1} parent=31 // pred_check_branch
          %240 = sbr.rel (%p238) target = $region36
        $region35: #{tpu_custom_call.1} parent=31 // pred_region
          %s241 = sand.u32 %s41, 1
          %s242 = scalar_lea.sflag [#allocation5], %s241
          %s243 = sand.u32 %s41, 1
          %s244 = smul.addr %s243, 16
          %s245 = scalar_lea.vmem [#allocation4], %s244
          %s246 = smul.u32 2, %s26
          %s248 = ssub.s32 256, 256
          %249 = vsyncadd %s242, %s248
          %s250 = smul.addr %s246, 128
          %s251 = scalar_lea.hbm %s0, %s250
          %s252 = sshll.u32 %s245, 4
          %s253 = int_to_ptr.vmem [resolvable:$true] %s252
          %258 = dma.hbm_to_vmem [thread:$0]  %s251, 256, %s253, %s242, 128, 128, 8
        $region36: #{tpu_custom_call.1} parent=31 // pred_fallthru
          _
      $region32: #{tpu_custom_call.1} parent=5 // pred_fallthru
        _
      %p259 = scmp.le.s32.totalorder 1, %s19
      %p260 = scmp.lt.s32.totalorder %s19, 3
      %p261 = pnand %p259, %p260
      %p262 = pneg %p261
      // Predicated region
      $region37: #{tpu_custom_call.1} parent=5 // pred_check
        _
      $region38: #{tpu_custom_call.1} parent=5 // pred_check_branch
        %264 = sbr.rel (%p261) target = $region40
      $region39: #{tpu_custom_call.1} parent=5 // pred_region
        %s265 = ssub.s32 %s19, 1
        %s266 = sand.u32 %s44, 1
        %s267 = scalar_lea.sflag [#allocation5], %s266
        %s268 = sand.u32 %s44, 1
        %s269 = smul.addr %s268, 16
        %s270 = scalar_lea.vmem [#allocation4], %s269
        // Predicated region
        $region41: #{tpu_custom_call.1} parent=39 // pred_check
          %p271 = pneg %p57
        $region42: #{tpu_custom_call.1} parent=39 // pred_check_branch
          %273 = sbr.rel (%p271) target = $region44
        $region43: #{tpu_custom_call.1} parent=39 // pred_region
          %274 = dma.done %s267, 256
        $region44: #{tpu_custom_call.1} parent=39 // pred_fallthru
          _
        // Predicated region
        $region45: #{tpu_custom_call.1} parent=39 // pred_check
          %p275 = pneg %p83
        $region46: #{tpu_custom_call.1} parent=39 // pred_check_branch
          %277 = sbr.rel (%p275) target = $region48
        $region47: #{tpu_custom_call.1} parent=39 // pred_region
          %278 = dma.done [#allocation8], 256
        $region48: #{tpu_custom_call.1} parent=39 // pred_fallthru
          _
        // Predicated region
        $region49: #{tpu_custom_call.1} parent=39 // pred_check
          %p279 = pneg %p104
        $region50: #{tpu_custom_call.1} parent=39 // pred_check_branch
          %281 = sbr.rel (%p279) target = $region52
        $region51: #{tpu_custom_call.1} parent=39 // pred_region
          %282 = dma.done [#allocation8], 512
        $region52: #{tpu_custom_call.1} parent=39 // pred_fallthru
          _
        // Predicated region
        $region53: #{tpu_custom_call.1} parent=39 // pred_check
          %p283 = pneg %p125
        $region54: #{tpu_custom_call.1} parent=39 // pred_check_branch
          %285 = sbr.rel (%p283) target = $region56
        $region55: #{tpu_custom_call.1} parent=39 // pred_region
          %286 = dma.done [#allocation11], 512
        $region56: #{tpu_custom_call.1} parent=39 // pred_fallthru
          _
        %s287 = sand.u32 %s44, 1
        %s288 = scalar_lea.sflag [#allocation5], %s287
        %s289 = sand.u32 %s44, 1
        %s290 = smul.addr %s289, 16
        %s291 = scalar_lea.vmem [#allocation4], %s290
        %p292 = pneg %p57
        %p293 = pneg %p54
        %p294 = pneg %p83
        %p295 = pneg %p80
        %p296 = pneg %p104
        %p297 = pneg %p101
        %p298 = pneg %p125
        %p299 = pneg %p122
        %p300 = pneg %p146
        %p301 = pneg %p143
        %p302 = pneg %p174
        %p303 = pneg %p171
        %s304 = sand.u32 %s161, 1
        %s305 = scalar_lea.sflag [#allocation6], %s304
        %s306 = sand.u32 %s161, 1
        %s307 = smul.addr %s306, 16
        %s308 = scalar_lea.vmem [#allocation12], %s307
        %s309 = smul.u32 2, %s28
        %s310 = smul.u32 2, %s29
        %s311 = smul.u32 2, %s29
        %p312 = scmp.eq.s32.totalorder %s29, 0
        // Predicated region
        $region57: #{tpu_custom_call.1} parent=39 // pred_check
          %p313 = pneg %p312
        $region58: #{tpu_custom_call.1} parent=39 // pred_check_branch
          %315 = sbr.rel (%p313) target = $region60
        $region59: #{tpu_custom_call.1} parent=39 // pred_region
          %v316 = vld [vmem:[%s270] sm:$0xff]
          %v317 = vld [vmem:[%s270 + $0x8] sm:$0xff]
          %v318 = vld [vmem:[#allocation9] sm:$0xff]
          %v319 = vld [vmem:[#allocation9 + $0x8] sm:$0xff]
          %v320 = vld [vmem:[#allocation9 + $0x10] sm:$0xff]
          %v321 = vld [vmem:[#allocation9 + $0x18] sm:$0xff]
          %vm322 = vcmask 261120
          %v324 = vsel %vm322, %v316, 0
          %v327 = vsel %vm322, %v317, 0
          %329 = vmatprep.subr.mxu0 0.0
          %330 = vmatpush1.msra.mxu0 0.0
          %331 = vmatprep.subr.mxu0 0.0
          %332 = vmatpush1.msra.mxu0 0.0
          %333 = vmatprep.subr.mxu0 0.0
          %334 = vmatpush1.msra.mxu0 0.0
          %335 = vmatprep.subr.mxu0 0.0
          %336 = vmatpush1.msra.mxu0 0.0
          %337 = vmatprep.subr.mxu0 0.0
          %338 = vmatpush1.msra.mxu0 0.0
          %339 = vmatprep.subr.mxu0 0.0
          %340 = vmatpush1.msra.mxu0 0.0
          %341 = vmatprep.subr.mxu0 0.0
          %342 = vmatpush1.msra.mxu0 0.0
          %343 = vmatprep.subr.mxu0 0.0
          %344 = vmatpush1.msra.mxu0 0.0
          %345 = vmatprep.subr.mxu0 0.0
          %346 = vmatpush1.msra.mxu0 0.0
          %347 = vmatprep.subr.mxu0 0.0
          %348 = vmatpush1.msra.mxu0 0.0
          %349 = vmatprep.subr.mxu0 0.0
          %350 = vmatpush1.msra.mxu0 0.0
          %351 = vmatprep.subr.mxu0 0.0
          %352 = vmatpush1.msra.mxu0 0.0
          %353 = vmatprep.subr.mxu0 0.0
          %354 = vmatpush1.msra.mxu0 %v321
          %355 = vmatprep.subr.mxu0 0.0
          %356 = vmatpush1.msra.mxu0 %v320
          %357 = vmatprep.subr.mxu0 0.0
          %358 = vmatpush1.msra.mxu0 %v319
          %359 = vmatprep.subr.mxu0 0.0
          %360 = vmatpush1.msra.mxu0 %v318
          %361 = vmatprep.subr.mxu0 0.0
          %362 = vmatpush2.msra.mxu0 0.0
          %363 = vmatprep.subr.mxu0 0.0
          %364 = vmatpush2.msra.mxu0 0.0
          %365 = vmatprep.subr.mxu0 0.0
          %366 = vmatpush2.msra.mxu0 0.0
          %367 = vmatprep.subr.mxu0 0.0
          %368 = vmatpush2.msra.mxu0 0.0
          %369 = vmatprep.subr.mxu0 0.0
          %370 = vmatpush2.msra.mxu0 0.0
          %371 = vmatprep.subr.mxu0 0.0
          %372 = vmatpush2.msra.mxu0 0.0
          %373 = vmatprep.subr.mxu0 0.0
          %374 = vmatpush2.msra.mxu0 0.0
          %375 = vmatprep.subr.mxu0 0.0
          %376 = vmatpush2.msra.mxu0 0.0
          %377 = vmatprep.subr.mxu0 0.0
          %378 = vmatpush2.msra.mxu0 0.0
          %379 = vmatprep.subr.mxu0 0.0
          %380 = vmatpush2.msra.mxu0 0.0
          %381 = vmatprep.subr.mxu0 0.0
          %382 = vmatpush2.msra.mxu0 0.0
          %383 = vmatprep.subr.mxu0 0.0
          %384 = vmatpush2.msra.mxu0 0.0
          %385 = vmatprep.subr.mxu0 0.0
          %386 = vmatpush2.msra.mxu0 0.0
          %387 = vmatprep.subr.mxu0 0.0
          %388 = vmatpush2.msra.mxu0 0.0
          %389 = vmatprep.subr.mxu0 0.0
          %390 = vmatpush2.msra.mxu0 0.0
          %391 = vmatprep.subr.mxu0 0.0
          %392 = vmatpush2.msra.mxu0 0.0
          %393 = vmatprep.mubr.f32.mxu0 0.0
          %394 = vmatmul.mubr.f32.gmra.mxu0 %v324
          %v395 = vpop.f32.mrf.mxu0
          %v396 = vadd.f32 0.0, %v395
          %v397 = vpop.f32.mrf.mxu0
          %398 = vmatprep.mubr.f32.mxu0 0.0
          %399 = vmatmul.mubr.f32.gmra.mxu0 %v327
          %v400 = vpop.f32.mrf.mxu0
          %v401 = vadd.f32 0.0, %v400
          %v402 = vpop.f32.mrf.mxu0
          %403 = vdwg.mxu0
          %v404 = vld [vmem:[#allocation10] sm:$0xff]
          %v405 = vld [vmem:[#allocation10 + $0x8] sm:$0xff]
          %v406 = vld [vmem:[#allocation10 + $0x10] sm:$0xff]
          %v407 = vld [vmem:[#allocation10 + $0x18] sm:$0xff]
          %408 = vmatprep.subr.mxu0 0.0
          %409 = vmatpush1.msra.mxu0 0.0
          %410 = vmatprep.subr.mxu0 0.0
          %411 = vmatpush1.msra.mxu0 0.0
          %412 = vmatprep.subr.mxu0 0.0
          %413 = vmatpush1.msra.mxu0 0.0
          %414 = vmatprep.subr.mxu0 0.0
          %415 = vmatpush1.msra.mxu0 0.0
          %416 = vmatprep.subr.mxu0 0.0
          %417 = vmatpush1.msra.mxu0 0.0
          %418 = vmatprep.subr.mxu0 0.0
          %419 = vmatpush1.msra.mxu0 0.0
          %420 = vmatprep.subr.mxu0 0.0
          %421 = vmatpush1.msra.mxu0 0.0
          %422 = vmatprep.subr.mxu0 0.0
          %423 = vmatpush1.msra.mxu0 0.0
          %424 = vmatprep.subr.mxu0 0.0
          %425 = vmatpush1.msra.mxu0 0.0
          %426 = vmatprep.subr.mxu0 0.0
          %427 = vmatpush1.msra.mxu0 0.0
          %428 = vmatprep.subr.mxu0 0.0
          %429 = vmatpush1.msra.mxu0 0.0
          %430 = vmatprep.subr.mxu0 0.0
          %431 = vmatpush1.msra.mxu0 0.0
          %432 = vmatprep.subr.mxu0 0.0
          %433 = vmatpush1.msra.mxu0 %v407
          %434 = vmatprep.subr.mxu0 0.0
          %435 = vmatpush1.msra.mxu0 %v406
          %436 = vmatprep.subr.mxu0 0.0
          %437 = vmatpush1.msra.mxu0 %v405
          %438 = vmatprep.subr.mxu0 0.0
          %439 = vmatpush1.msra.mxu0 %v404
          %440 = vmatprep.subr.mxu0 0.0
          %441 = vmatpush2.msra.mxu0 0.0
          %442 = vmatprep.subr.mxu0 0.0
          %443 = vmatpush2.msra.mxu0 0.0
          %444 = vmatprep.subr.mxu0 0.0
          %445 = vmatpush2.msra.mxu0 0.0
          %446 = vmatprep.subr.mxu0 0.0
          %447 = vmatpush2.msra.mxu0 0.0
          %448 = vmatprep.subr.mxu0 0.0
          %449 = vmatpush2.msra.mxu0 0.0
          %450 = vmatprep.subr.mxu0 0.0
          %451 = vmatpush2.msra.mxu0 0.0
          %452 = vmatprep.subr.mxu0 0.0
          %453 = vmatpush2.msra.mxu0 0.0
          %454 = vmatprep.subr.mxu0 0.0
          %455 = vmatpush2.msra.mxu0 0.0
          %456 = vmatprep.subr.mxu0 0.0
          %457 = vmatpush2.msra.mxu0 0.0
          %458 = vmatprep.subr.mxu0 0.0
          %459 = vmatpush2.msra.mxu0 0.0
          %460 = vmatprep.subr.mxu0 0.0
          %461 = vmatpush2.msra.mxu0 0.0
          %462 = vmatprep.subr.mxu0 0.0
          %463 = vmatpush2.msra.mxu0 0.0
          %464 = vmatprep.subr.mxu0 0.0
          %465 = vmatpush2.msra.mxu0 0.0
          %466 = vmatprep.subr.mxu0 0.0
          %467 = vmatpush2.msra.mxu0 0.0
          %468 = vmatprep.subr.mxu0 0.0
          %469 = vmatpush2.msra.mxu0 0.0
          %470 = vmatprep.subr.mxu0 0.0
          %471 = vmatpush2.msra.mxu0 0.0
          %472 = vmatprep.mubr.f32.mxu0 0.0
          %473 = vmatmul.mubr.f32.gmra.mxu0 %v324
          %v474 = vpop.f32.mrf.mxu0
          %v475 = vadd.f32 0.0, %v474
          %v476 = vpop.f32.mrf.mxu0
          %477 = vmatprep.mubr.f32.mxu0 0.0
          %478 = vmatmul.mubr.f32.gmra.mxu0 %v327
          %v479 = vpop.f32.mrf.mxu0
          %v480 = vadd.f32 0.0, %v479
          %v481 = vpop.f32.mrf.mxu0
          %482 = vdwg.mxu0
          %v483 = vcombine.high %v396, 0.0
          %v485 = vunpack.c.l.s4 1983009808
          %v486 = vunpack.c.0.s8 %v485
          %v487 = vlaneseq
          %v488 = vshrl.u32 %v487, 7
          %v489 = vsub.s32 %v486, %v488
          %v490 = vrot.slane %v396, %v489
          %v492 = vunpack.c.l.s4 1983009808
          %v493 = vunpack.c.0.s8 %v492
          %v494 = vlaneseq
          %v495 = vshrl.u32 %v494, 7
          %v496 = vsub.s32 %v493, %v495
          %v497 = vrot.slane %v483, %v496
          %v498 = vcombine.high %v490, 0.0
          %v500 = vunpack.c.l.s4 1934713408
          %v501 = vunpack.c.0.s8 %v500
          %v502 = vlaneseq
          %v503 = vshrl.u32 %v502, 7
          %v504 = vsub.s32 %v501, %v503
          %v505 = vrot.slane %v490, %v504
          %v507 = vunpack.c.l.s4 1934713408
          %v508 = vunpack.c.0.s8 %v507
          %v509 = vlaneseq
          %v510 = vshrl.u32 %v509, 7
          %v511 = vsub.s32 %v508, %v510
          %v512 = vrot.slane %v498, %v511
          %v513 = vcombine.high %v497, 0.0
          %v515 = vunpack.c.l.s4 1934713408
          %v516 = vunpack.c.0.s8 %v515
          %v517 = vlaneseq
          %v518 = vshrl.u32 %v517, 7
          %v519 = vsub.s32 %v516, %v518
          %v520 = vrot.slane %v497, %v519
          %v522 = vunpack.c.l.s4 1934713408
          %v523 = vunpack.c.0.s8 %v522
          %v524 = vlaneseq
          %v525 = vshrl.u32 %v524, 7
          %v526 = vsub.s32 %v523, %v525
          %v527 = vrot.slane %v513, %v526
          %v528 = vcombine.high %v505, 0.0
          %v529 = vcombine.high %v512, 0.0
          %v530 = vcombine.high %v520, 0.0
          %v531 = vcombine.high %v527, 0.0
          %v532 = vcombine.high %v401, 0.0
          %v534 = vunpack.c.l.s4 1983009808
          %v535 = vunpack.c.0.s8 %v534
          %v536 = vlaneseq
          %v537 = vshrl.u32 %v536, 7
          %v538 = vsub.s32 %v535, %v537
          %v539 = vrot.slane %v401, %v538
          %v541 = vunpack.c.l.s4 1983009808
          %v542 = vunpack.c.0.s8 %v541
          %v543 = vlaneseq
          %v544 = vshrl.u32 %v543, 7
          %v545 = vsub.s32 %v542, %v544
          %v546 = vrot.slane %v532, %v545
          %v547 = vcombine.high %v539, 0.0
          %v549 = vunpack.c.l.s4 1934713408
          %v550 = vunpack.c.0.s8 %v549
          %v551 = vlaneseq
          %v552 = vshrl.u32 %v551, 7
          %v553 = vsub.s32 %v550, %v552
          %v554 = vrot.slane %v539, %v553
          %v556 = vunpack.c.l.s4 1934713408
          %v557 = vunpack.c.0.s8 %v556
          %v558 = vlaneseq
          %v559 = vshrl.u32 %v558, 7
          %v560 = vsub.s32 %v557, %v559
          %v561 = vrot.slane %v547, %v560
          %v562 = vcombine.high %v546, 0.0
          %v564 = vunpack.c.l.s4 1934713408
          %v565 = vunpack.c.0.s8 %v564
          %v566 = vlaneseq
          %v567 = vshrl.u32 %v566, 7
          %v568 = vsub.s32 %v565, %v567
          %v569 = vrot.slane %v546, %v568
          %v571 = vunpack.c.l.s4 1934713408
          %v572 = vunpack.c.0.s8 %v571
          %v573 = vlaneseq
          %v574 = vshrl.u32 %v573, 7
          %v575 = vsub.s32 %v572, %v574
          %v576 = vrot.slane %v562, %v575
          %v577 = vcombine.high %v554, 0.0
          %v578 = vcombine.high %v561, 0.0
          %v579 = vcombine.high %v569, 0.0
          %v580 = vcombine.high %v576, 0.0
          %v597 = vrot.slane %v528, 7
          %vm598 = vcmask 1041409
          %v599 = vsel %vm598, %v597, %v505
          %v600 = vrot.slane %v512, 6
          %vm601 = vcmask 1042434
          %v602 = vsel %vm601, %v600, %v599
          %v603 = vrot.slane %v529, 5
          %vm604 = vcmask 1043459
          %v605 = vsel %vm604, %v603, %v602
          %v606 = vrot.slane %v520, 4
          %vm607 = vcmask 1044484
          %v608 = vsel %vm607, %v606, %v605
          %v609 = vrot.slane %v530, 3
          %vm610 = vcmask 1045509
          %v611 = vsel %vm610, %v609, %v608
          %v612 = vrot.slane %v527, 2
          %vm613 = vcmask 1046534
          %v614 = vsel %vm613, %v612, %v611
          %v615 = vrot.slane %v531, 1
          %vm616 = vcmask 1047559
          %v617 = vsel %vm616, %v615, %v614
          %v618 = vrot.slane %v577, 7
          %v619 = vsel %vm598, %v618, %v554
          %v620 = vrot.slane %v561, 6
          %v621 = vsel %vm601, %v620, %v619
          %v622 = vrot.slane %v578, 5
          %v623 = vsel %vm604, %v622, %v621
          %v624 = vrot.slane %v569, 4
          %v625 = vsel %vm607, %v624, %v623
          %v626 = vrot.slane %v579, 3
          %v627 = vsel %vm610, %v626, %v625
          %v628 = vrot.slane %v576, 2
          %v629 = vsel %vm613, %v628, %v627
          %v630 = vrot.slane %v580, 1
          %v631 = vsel %vm616, %v630, %v629
          %634 = vst.msk [vmem:[#allocation2] sm:$0xff] %vm322, %v617
          %635 = vst.msk [vmem:[#allocation2 + $0x8] sm:$0xff] %vm322, %v631
          %v636 = vcombine.high %v475, 0.0
          %v638 = vunpack.c.l.s4 1983009808
          %v639 = vunpack.c.0.s8 %v638
          %v640 = vlaneseq
          %v641 = vshrl.u32 %v640, 7
          %v642 = vsub.s32 %v639, %v641
          %v643 = vrot.slane %v475, %v642
          %v645 = vunpack.c.l.s4 1983009808
          %v646 = vunpack.c.0.s8 %v645
          %v647 = vlaneseq
          %v648 = vshrl.u32 %v647, 7
          %v649 = vsub.s32 %v646, %v648
          %v650 = vrot.slane %v636, %v649
          %v651 = vcombine.high %v643, 0.0
          %v653 = vunpack.c.l.s4 1934713408
          %v654 = vunpack.c.0.s8 %v653
          %v655 = vlaneseq
          %v656 = vshrl.u32 %v655, 7
          %v657 = vsub.s32 %v654, %v656
          %v658 = vrot.slane %v643, %v657
          %v660 = vunpack.c.l.s4 1934713408
          %v661 = vunpack.c.0.s8 %v660
          %v662 = vlaneseq
          %v663 = vshrl.u32 %v662, 7
          %v664 = vsub.s32 %v661, %v663
          %v665 = vrot.slane %v651, %v664
          %v666 = vcombine.high %v650, 0.0
          %v668 = vunpack.c.l.s4 1934713408
          %v669 = vunpack.c.0.s8 %v668
          %v670 = vlaneseq
          %v671 = vshrl.u32 %v670, 7
          %v672 = vsub.s32 %v669, %v671
          %v673 = vrot.slane %v650, %v672
          %v675 = vunpack.c.l.s4 1934713408
          %v676 = vunpack.c.0.s8 %v675
          %v677 = vlaneseq
          %v678 = vshrl.u32 %v677, 7
          %v679 = vsub.s32 %v676, %v678
          %v680 = vrot.slane %v666, %v679
          %v681 = vcombine.high %v658, 0.0
          %v682 = vcombine.high %v665, 0.0
          %v683 = vcombine.high %v673, 0.0
          %v684 = vcombine.high %v680, 0.0
          %v685 = vcombine.high %v480, 0.0
          %v687 = vunpack.c.l.s4 1983009808
          %v688 = vunpack.c.0.s8 %v687
          %v689 = vlaneseq
          %v690 = vshrl.u32 %v689, 7
          %v691 = vsub.s32 %v688, %v690
          %v692 = vrot.slane %v480, %v691
          %v694 = vunpack.c.l.s4 1983009808
          %v695 = vunpack.c.0.s8 %v694
          %v696 = vlaneseq
          %v697 = vshrl.u32 %v696, 7
          %v698 = vsub.s32 %v695, %v697
          %v699 = vrot.slane %v685, %v698
          %v700 = vcombine.high %v692, 0.0
          %v702 = vunpack.c.l.s4 1934713408
          %v703 = vunpack.c.0.s8 %v702
          %v704 = vlaneseq
          %v705 = vshrl.u32 %v704, 7
          %v706 = vsub.s32 %v703, %v705
          %v707 = vrot.slane %v692, %v706
          %v709 = vunpack.c.l.s4 1934713408
          %v710 = vunpack.c.0.s8 %v709
          %v711 = vlaneseq
          %v712 = vshrl.u32 %v711, 7
          %v713 = vsub.s32 %v710, %v712
          %v714 = vrot.slane %v700, %v713
          %v715 = vcombine.high %v699, 0.0
          %v717 = vunpack.c.l.s4 1934713408
          %v718 = vunpack.c.0.s8 %v717
          %v719 = vlaneseq
          %v720 = vshrl.u32 %v719, 7
          %v721 = vsub.s32 %v718, %v720
          %v722 = vrot.slane %v699, %v721
          %v724 = vunpack.c.l.s4 1934713408
          %v725 = vunpack.c.0.s8 %v724
          %v726 = vlaneseq
          %v727 = vshrl.u32 %v726, 7
          %v728 = vsub.s32 %v725, %v727
          %v729 = vrot.slane %v715, %v728
          %v730 = vcombine.high %v707, 0.0
          %v731 = vcombine.high %v714, 0.0
          %v732 = vcombine.high %v722, 0.0
          %v733 = vcombine.high %v729, 0.0
          %v750 = vrot.slane %v681, 7
          %v751 = vsel %vm598, %v750, %v658
          %v752 = vrot.slane %v665, 6
          %v753 = vsel %vm601, %v752, %v751
          %v754 = vrot.slane %v682, 5
          %v755 = vsel %vm604, %v754, %v753
          %v756 = vrot.slane %v673, 4
          %v757 = vsel %vm607, %v756, %v755
          %v758 = vrot.slane %v683, 3
          %v759 = vsel %vm610, %v758, %v757
          %v760 = vrot.slane %v680, 2
          %v761 = vsel %vm613, %v760, %v759
          %v762 = vrot.slane %v684, 1
          %v763 = vsel %vm616, %v762, %v761
          %v764 = vrot.slane %v730, 7
          %v765 = vsel %vm598, %v764, %v707
          %v766 = vrot.slane %v714, 6
          %v767 = vsel %vm601, %v766, %v765
          %v768 = vrot.slane %v731, 5
          %v769 = vsel %vm604, %v768, %v767
          %v770 = vrot.slane %v722, 4
          %v771 = vsel %vm607, %v770, %v769
          %v772 = vrot.slane %v732, 3
          %v773 = vsel %vm610, %v772, %v771
          %v774 = vrot.slane %v729, 2
          %v775 = vsel %vm613, %v774, %v773
          %v776 = vrot.slane %v733, 1
          %v777 = vsel %vm616, %v776, %v775
          %780 = vst.msk [vmem:[#allocation3] sm:$0xff] %vm322, %v763
          %781 = vst.msk [vmem:[#allocation3 + $0x8] sm:$0xff] %vm322, %v777
        $region60: #{tpu_custom_call.1} parent=39 // pred_fallthru
          _
        %v782 = vld [vmem:[#allocation7] sm:$0xff]
        %v783 = vld [vmem:[#allocation7 + $0x8] sm:$0xff]
        %v784 = vld [vmem:[#allocation2] sm:$0xff]
        %v785 = vld [vmem:[#allocation2 + $0x8] sm:$0xff]
        %s786 = smul.u32 %s29, 16
        %s787 = scalar_lea.vmem [#allocation3], %s786
        %v788 = vld [vmem:[%s787] sm:$0xff]
        %v789 = vld [vmem:[%s787 + $0x8] sm:$0xff]
        %vm790 = vcmask 130048
        %v792 = vsel %vm790, %v782, 0
        %v795 = vsel %vm790, %v783, 0
        %797 = vmatprep.subr.mxu0 0.0
        %798 = vmatpush1.msra.mxu0 0.0
        %799 = vmatprep.subr.mxu0 0.0
        %800 = vmatpush1.msra.mxu0 0.0
        %801 = vmatprep.subr.mxu0 0.0
        %802 = vmatpush1.msra.mxu0 0.0
        %803 = vmatprep.subr.mxu0 0.0
        %804 = vmatpush1.msra.mxu0 0.0
        %805 = vmatprep.subr.mxu0 0.0
        %806 = vmatpush1.msra.mxu0 0.0
        %807 = vmatprep.subr.mxu0 0.0
        %808 = vmatpush1.msra.mxu0 0.0
        %809 = vmatprep.subr.mxu0 0.0
        %810 = vmatpush1.msra.mxu0 0.0
        %811 = vmatprep.subr.mxu0 0.0
        %812 = vmatpush1.msra.mxu0 0.0
        %813 = vmatprep.subr.mxu0 0.0
        %814 = vmatpush1.msra.mxu0 0.0
        %815 = vmatprep.subr.mxu0 0.0
        %816 = vmatpush1.msra.mxu0 0.0
        %817 = vmatprep.subr.mxu0 0.0
        %818 = vmatpush1.msra.mxu0 0.0
        %819 = vmatprep.subr.mxu0 0.0
        %820 = vmatpush1.msra.mxu0 0.0
        %821 = vmatprep.subr.mxu0 0.0
        %822 = vmatpush1.msra.mxu0 0.0
        %823 = vmatprep.subr.mxu0 0.0
        %824 = vmatpush1.msra.mxu0 0.0
        %825 = vmatprep.subr.mxu0 0.0
        %826 = vmatpush1.msra.mxu0 %v785
        %827 = vmatprep.subr.mxu0 0.0
        %828 = vmatpush1.msra.mxu0 %v784
        %829 = vmatprep.subr.mxu0 0.0
        %830 = vmatpush2.msra.mxu0 0.0
        %831 = vmatprep.subr.mxu0 0.0
        %832 = vmatpush2.msra.mxu0 0.0
        %833 = vmatprep.subr.mxu0 0.0
        %834 = vmatpush2.msra.mxu0 0.0
        %835 = vmatprep.subr.mxu0 0.0
        %836 = vmatpush2.msra.mxu0 0.0
        %837 = vmatprep.subr.mxu0 0.0
        %838 = vmatpush2.msra.mxu0 0.0
        %839 = vmatprep.subr.mxu0 0.0
        %840 = vmatpush2.msra.mxu0 0.0
        %841 = vmatprep.subr.mxu0 0.0
        %842 = vmatpush2.msra.mxu0 0.0
        %843 = vmatprep.subr.mxu0 0.0
        %844 = vmatpush2.msra.mxu0 0.0
        %845 = vmatprep.subr.mxu0 0.0
        %846 = vmatpush2.msra.mxu0 0.0
        %847 = vmatprep.subr.mxu0 0.0
        %848 = vmatpush2.msra.mxu0 0.0
        %849 = vmatprep.subr.mxu0 0.0
        %850 = vmatpush2.msra.mxu0 0.0
        %851 = vmatprep.subr.mxu0 0.0
        %852 = vmatpush2.msra.mxu0 0.0
        %853 = vmatprep.subr.mxu0 0.0
        %854 = vmatpush2.msra.mxu0 0.0
        %855 = vmatprep.subr.mxu0 0.0
        %856 = vmatpush2.msra.mxu0 0.0
        %857 = vmatprep.subr.mxu0 0.0
        %858 = vmatpush2.msra.mxu0 0.0
        %859 = vmatprep.subr.mxu0 0.0
        %860 = vmatpush2.msra.mxu0 0.0
        %861 = vmatprep.mubr.f32.mxu0 0.0
        %862 = vmatmul.mubr.f32.gmra.mxu0 %v792
        %v863 = vpop.f32.mrf.mxu0
        %v864 = vadd.f32 %v788, %v863
        %v865 = vpop.f32.mrf.mxu0
        %866 = vmatprep.mubr.f32.mxu0 0.0
        %867 = vmatmul.mubr.f32.gmra.mxu0 %v795
        %v868 = vpop.f32.mrf.mxu0
        %v869 = vadd.f32 %v789, %v868
        %v870 = vpop.f32.mrf.mxu0
        %871 = vdwg.mxu0
        %v872 = vld [vmem:[%s4] sm:$0x1]
        %v874 = vlaneseq
        %v875 = vshrl.u32 %v874, 7
        %v876 = vsub.s32 0, %v875
        %v877 = vrot.slane %v872, %v876
        %v879 = vadd.f32 %v864, %v877
        %v880 = vadd.f32 %v869, %v877
        %vm881 = vcmask 261120
        %882 = vst.msk [vmem:[%s308] sm:$0xff] %vm881, %v879
        %883 = vst.msk [vmem:[%s308 + $0x8] sm:$0xff] %vm881, %v880
        %s884 = sand.u32 %s161, 1
        %s885 = scalar_lea.sflag [#allocation6], %s884
        %s886 = sand.u32 %s161, 1
        %s887 = smul.addr %s886, 16
        %s888 = scalar_lea.vmem [#allocation12], %s887
        // Predicated region
        $region61: #{tpu_custom_call.1} parent=39 // pred_check
          %p889 = pneg %p171
        $region62: #{tpu_custom_call.1} parent=39 // pred_check_branch
          %891 = sbr.rel (%p889) target = $region64
        $region63: #{tpu_custom_call.1} parent=39 // pred_region
          %s892 = smul.u32 2, %s29
          %s894 = ssub.s32 256, 256
          %895 = vsyncadd %s885, %s894
          %s896 = smul.addr %s28, 2
          %s897 = sadd.s32 %s892, %s896
          %s898 = smul.addr %s897, 128
          %s899 = scalar_lea.hbm %s5, %s898
          %s900 = sshll.u32 %s888, 4
          %s901 = int_to_ptr.vmem [resolvable:$true] %s900
          %906 = dma.vmem_to_hbm [thread:$0]  %s901, 256, %s899, %s885, 128, 128, 8
        $region64: #{tpu_custom_call.1} parent=39 // pred_fallthru
          _
      $region40: #{tpu_custom_call.1} parent=5 // pred_fallthru
        _
      %p907 = scmp.le.s32.totalorder 2, %s19
      // Predicated region
      $region65: #{tpu_custom_call.1} parent=5 // pred_check
        %p908 = pneg %p907
      $region66: #{tpu_custom_call.1} parent=5 // pred_check_branch
        %910 = sbr.rel (%p908) target = $region68
      $region67: #{tpu_custom_call.1} parent=5 // pred_region
        %s911 = ssub.s32 %s19, 2
        // Predicated region
        $region69: #{tpu_custom_call.1} parent=67 // pred_check
          %p912 = pneg %p177
        $region70: #{tpu_custom_call.1} parent=67 // pred_check_branch
          %914 = sbr.rel (%p912) target = $region72
        $region71: #{tpu_custom_call.1} parent=67 // pred_region
          %s915 = sand.u32 %s162, 1
          %s916 = scalar_lea.sflag [#allocation6], %s915
          %s917 = sand.u32 %s162, 1
          %s918 = smul.addr %s917, 16
          %s919 = scalar_lea.vmem [#allocation12], %s918
          %920 = dma.done %s916, 256
        $region72: #{tpu_custom_call.1} parent=67 // pred_fallthru
          _
      $region68: #{tpu_custom_call.1} parent=5 // pred_fallthru
        _
    $region6: #{tpu_custom_call.1} parent=1 // loop_footer
      %s23 = sadd.s32 1, %s19
    $region7: #{tpu_custom_call.1} parent=1 // loop_footer_branch
      %18 = sbr.rel target = $region3
    $region8: #{tpu_custom_call.1} parent=1 // loop_exit
      _
    %921 = vsyncpa [#allocation5], 1
    %s922 = scalar_lea.sflag [#allocation5], 1
    %923 = vsyncpa %s922, 1
    %924 = vsyncpa [#allocation8], 1
    %925 = vsyncpa [#allocation11], 1
    %926 = vsyncpa [#allocation6], 1
    %s927 = scalar_lea.sflag [#allocation6], 1
    %928 = vsyncpa %s927, 1

</llo_original>
